<compile_context>
chip_gen: v7x
topology: tpu7x:2x2x1
jax: 0.10.0
libtpu: 0.0.40
codegen_flags: <defaults>
</compile_context>

<pallas_src>
import functools

import jax
import jax.numpy as jnp
from jax.experimental import pallas as pl
from jax.experimental.pallas import tpu as pltpu

_BIG = 1.0e30  # finite f32 sentinel; sqrt(_BIG)=1e15 still dwarfs any real distance


def _triplet_kernel_l2(rowlab_ref, collab_ref, rowsq_ref, colsq_ref,
                       erow_ref, ecol_ref, out_ref, hp_ref, hn_ref,
                       *, margin, tm, tn):
    i = pl.program_id(0)
    j = pl.program_id(1)

    # Init running accumulators at the first column tile of each anchor-row tile.
    @pl.when(j == 0)
    def _init():
        hp_ref[...] = jnp.zeros_like(hp_ref)
        hn_ref[...] = jnp.full_like(hn_ref, _BIG)

    # Gram-matrix identity on the MXU: d2 = |e_i|^2 + |e_j|^2 - 2 e_i.e_j
    gram = jax.lax.dot_general(
        erow_ref[...], ecol_ref[...], (((1,), (1,)), ((), ())),
        preferred_element_type=jnp.float32)                 # (TM, TN) f32 acc
    d2 = jnp.maximum(rowsq_ref[...] + colsq_ref[...] - 2.0 * gram, 0.0)

    # Masks: label equality from separately tiled row/col labels (no transpose),
    # global-index diagonal exclusion for the positive mask.
    eq = rowlab_ref[...] == collab_ref[...]                 # (TM, TN) bool
    gr = i * tm + jax.lax.broadcasted_iota(jnp.int32, (tm, tn), 0)
    gc = j * tn + jax.lax.broadcasted_iota(jnp.int32, (tm, tn), 1)
    not_diag = gr != gc

    pos_d2 = jnp.where(jnp.logical_and(eq, not_diag), d2, 0.0)
    neg_d2 = jnp.where(eq, _BIG, d2)

    # max/min are monotone in d^2 -> accumulate squared distances.
    hp_ref[...] = jnp.maximum(hp_ref[...], jnp.max(pos_d2, axis=1, keepdims=True))
    hn_ref[...] = jnp.minimum(hn_ref[...], jnp.min(neg_d2, axis=1, keepdims=True))

    # Finalize: sqrt only on the 2 extremes per anchor, then hinge.
    @pl.when(j == pl.num_programs(1) - 1)
    def _finalize():
        hp = jnp.sqrt(hp_ref[...])
        hn = jnp.sqrt(hn_ref[...])
        out_ref[...] = jnp.maximum(hp - hn + margin, 0.0)


def _triplet_kernel_generic(rowlab_ref, collab_ref, erow_ref, ecol_ref,
                            out_ref, hp_ref, hn_ref, *, margin, p, tm, tn):
    i = pl.program_id(0)
    j = pl.program_id(1)

    @pl.when(j == 0)
    def _init():
        hp_ref[...] = jnp.zeros_like(hp_ref)
        hn_ref[...] = jnp.full_like(hn_ref, _BIG)

    erow = erow_ref[...].astype(jnp.float32)                # (TM, D)
    ecol = ecol_ref[...].astype(jnp.float32)                # (TN, D)
    diff = jnp.abs(erow[:, None, :] - ecol[None, :, :])     # (TM, TN, D)
    if p == 1.0:
        dp = jnp.sum(diff, axis=-1)                         # true L1 distance
    else:
        dp = jnp.sum(jnp.power(diff, p), axis=-1)           # dist^p, root deferred

    eq = rowlab_ref[...] == collab_ref[...]
    gr = i * tm + jax.lax.broadcasted_iota(jnp.int32, (tm, tn), 0)
    gc = j * tn + jax.lax.broadcasted_iota(jnp.int32, (tm, tn), 1)
    not_diag = gr != gc

    pos = jnp.where(jnp.logical_and(eq, not_diag), dp, 0.0)
    neg = jnp.where(eq, _BIG, dp)

    hp_ref[...] = jnp.maximum(hp_ref[...], jnp.max(pos, axis=1, keepdims=True))
    hn_ref[...] = jnp.minimum(hn_ref[...], jnp.min(neg, axis=1, keepdims=True))

    @pl.when(j == pl.num_programs(1) - 1)
    def _finalize():
        hp = hp_ref[...]
        hn = hn_ref[...]
        if p != 1.0:
            inv_p = 1.0 / p
            hp = jnp.power(hp, inv_p)
            hn = jnp.power(hn, inv_p)
        out_ref[...] = jnp.maximum(hp - hn + margin, 0.0)


def _pick_tile(b, target, step):
    """Largest multiple-of-`step` divisor of b not exceeding target, else b."""
    if b <= target:
        return b
    for t in range(target, step - 1, -step):
        if b % t == 0:
            return t
    return b


def triplet_margin_loss(embeddings, labels, margin=1.0, p=2.0):
    """Pallas equivalent of TripletMarginLoss.forward(embeddings, labels)."""
    B, D = embeddings.shape
    p = float(p)
    margin = float(margin)

    row_lab = labels.astype(jnp.int32).reshape(B, 1)
    col_lab = labels.astype(jnp.int32).reshape(1, B)   # pre-"transposed" in wrapper

    itemsize = jnp.dtype(embeddings.dtype).itemsize

    if p == 2.0:
        tm = _pick_tile(B, 256, 8)
        tn = _pick_tile(B, 256, 128)
        gi, gj = B // tm, B // tn

        # Squared norms hoisted out of the kernel (computed once, not per tile).
        sq = jnp.sum(jnp.square(embeddings.astype(jnp.float32)), axis=1)
        row_sq = sq.reshape(B, 1)
        col_sq = sq.reshape(1, B)

        kernel = functools.partial(_triplet_kernel_l2, margin=margin, tm=tm, tn=tn)
        cost = pl.CostEstimate(
            flops=2 * B * B * D + 6 * B * B,
            transcendentals=2 * B,
            bytes_accessed=(1 + gi) * B * D * itemsize + 4 * B * 4 + B * 4,
        )
        in_specs = [
            pl.BlockSpec((tm, 1), lambda i, j: (i, 0)),    # row labels
            pl.BlockSpec((1, tn), lambda i, j: (0, j)),    # col labels
            pl.BlockSpec((tm, 1), lambda i, j: (i, 0)),    # row squared norms
            pl.BlockSpec((1, tn), lambda i, j: (0, j)),    # col squared norms
            pl.BlockSpec((tm, D), lambda i, j: (i, 0)),    # anchor-row embeddings
            pl.BlockSpec((tn, D), lambda i, j: (j, 0)),    # column embeddings
        ]
        operands = (row_lab, col_lab, row_sq, col_sq, embeddings, embeddings)
    else:
        # Generic-p path materializes a (tm, tn, D) tile -> keep tiles small.
        tm = _pick_tile(B, 8, 8)
        tn = _pick_tile(B, 128, 128)
        gi, gj = B // tm, B // tn

        kernel = functools.partial(
            _triplet_kernel_generic, margin=margin, p=p, tm=tm, tn=tn)
        cost = pl.CostEstimate(
            flops=3 * B * B * D,
            transcendentals=(B * B * D if p != 1.0 else 0) + 2 * B,
            bytes_accessed=(1 + gi) * B * D * itemsize + 2 * B * 4 + B * 4,
        )
        in_specs = [
            pl.BlockSpec((tm, 1), lambda i, j: (i, 0)),
            pl.BlockSpec((1, tn), lambda i, j: (0, j)),
            pl.BlockSpec((tm, D), lambda i, j: (i, 0)),
            pl.BlockSpec((tn, D), lambda i, j: (j, 0)),
        ]
        operands = (row_lab, col_lab, embeddings, embeddings)

    per_anchor = pl.pallas_call(
        kernel,
        out_shape=jax.ShapeDtypeStruct((B, 1), jnp.float32),
        grid_spec=pltpu.PrefetchScalarGridSpec(
            num_scalar_prefetch=0,
            grid=(gi, gj),
            in_specs=in_specs,
            out_specs=pl.BlockSpec((tm, 1), lambda i, j: (i, 0)),
            scratch_shapes=[
                pltpu.VMEM((tm, 1), jnp.float32),   # running hardest positive (d^2 / d^p)
                pltpu.VMEM((tm, 1), jnp.float32),   # running hardest negative (d^2 / d^p)
            ],
        ),
        compiler_params=pltpu.CompilerParams(
            dimension_semantics=("parallel", "arbitrary"),
            vmem_limit_bytes=32 * 1024 * 1024,
        ),
        cost_estimate=cost,
    )(*operands)

    return jnp.mean(per_anchor)


if __name__ == "__main__":
    key = jax.random.PRNGKey(0)
    B, D = 8, 32  # small batch of embeddings
    embeddings = jax.random.normal(key, (B, D), dtype=jnp.float32)
    # deterministic labels with both positive and negative pairs per anchor
    labels = jnp.array([0, 0, 1, 1, 2, 2, 3, 3], dtype=jnp.int32)

    loss = triplet_margin_loss(embeddings, labels, margin=1.0, p=2.0)
    jax.block_until_ready(loss)

    # reference check in plain JAX (classic batch-hard formulation)
    e = embeddings
    dist = jnp.sqrt(jnp.sum((e[:, None, :] - e[None, :, :]) ** 2, axis=-1))
    eq = labels[:, None] == labels[None, :]
    pos_mask = jnp.where(eq & ~jnp.eye(B, dtype=bool), 1.0, 0.0)
    neg_mask = jnp.where(~eq, 1.0, 0.0)
    hp = jnp.max(pos_mask * dist, axis=1)
    hn = jnp.min(dist + jnp.max(dist, axis=1, keepdims=True) * (1.0 - neg_mask), axis=1)
    ref = jnp.mean(jnp.maximum(hp - hn + 1.0, 0.0))
    assert jnp.allclose(loss, ref, atol=1e-4, rtol=1e-4), (loss, ref)

    print("KERNEL_OK")
</pallas_src>

<mosaic_0001>
module attributes {stable_mosaic.version = 11 : i64} {
  func.func @_triplet_kernel_l2(%arg0: i32, %arg1: i32, %arg2: memref<8x1xi32, #tpu.memory_space<vmem>>, %arg3: memref<1x8xi32, #tpu.memory_space<vmem>>, %arg4: memref<8x1xf32, #tpu.memory_space<vmem>>, %arg5: memref<1x8xf32, #tpu.memory_space<vmem>>, %arg6: memref<8x32xf32, #tpu.memory_space<vmem>>, %arg7: memref<8x32xf32, #tpu.memory_space<vmem>>, %arg8: memref<8x1xf32, #tpu.memory_space<vmem>>, %arg9: memref<8x1xf32, #tpu.memory_space<vmem>>, %arg10: memref<8x1xf32, #tpu.memory_space<vmem>>) attributes {dimension_semantics = [#tpu.dimension_semantics<parallel>, #tpu.dimension_semantics<arbitrary>], iteration_bounds = array<i64: 1, 1>, scalar_prefetch = 0 : i64, scratch_operands = 2 : i64, tpu.core_type = #tpu.core_type<tc>, window_params = [{transform_indices = @transform_0, window_bounds = array<i64: 8, 1>}, {transform_indices = @transform_1, window_bounds = array<i64: 1, 8>}, {transform_indices = @transform_2, window_bounds = array<i64: 8, 1>}, {transform_indices = @transform_3, window_bounds = array<i64: 1, 8>}, {transform_indices = @transform_4, window_bounds = array<i64: 8, 32>}, {transform_indices = @transform_5, window_bounds = array<i64: 8, 32>}, {transform_indices = @transform_6, window_bounds = array<i64: 8, 1>}]} {
    %c0_i32 = arith.constant 0 : i32
    %0 = arith.cmpi eq, %arg1, %c0_i32 : i32
    %1 = arith.extui %0 : i1 to i32
    %c0_i32_0 = arith.constant 0 : i32
    %2 = arith.cmpi ne, %1, %c0_i32_0 : i32
    scf.if %2 {
      %cst_29 = arith.constant 0.000000e+00 : f32
      %48 = vector.broadcast %cst_29 : f32 to vector<8x1xf32>
      %c0_30 = arith.constant 0 : index
      %c0_31 = arith.constant 0 : index
      %49 = vector.load %arg9[%c0_30, %c0_31] : memref<8x1xf32, #tpu.memory_space<vmem>>, vector<8x1xf32>
      tpu.vector_store %arg9[%c0_30, %c0_31], %48 {strides = array<i32>} : memref<8x1xf32, #tpu.memory_space<vmem>>, vector<8x1xf32>,
      %cst_32 = arith.constant 1.000000e+30 : f32
      %50 = vector.broadcast %cst_32 : f32 to vector<8x1xf32>
      %c0_33 = arith.constant 0 : index
      %c0_34 = arith.constant 0 : index
      %51 = vector.load %arg10[%c0_33, %c0_34] : memref<8x1xf32, #tpu.memory_space<vmem>>, vector<8x1xf32>
      tpu.vector_store %arg10[%c0_33, %c0_34], %50 {strides = array<i32>} : memref<8x1xf32, #tpu.memory_space<vmem>>, vector<8x1xf32>,
    } else {
    }
    %c0 = arith.constant 0 : index
    %c0_1 = arith.constant 0 : index
    %3 = vector.load %arg6[%c0, %c0_1] : memref<8x32xf32, #tpu.memory_space<vmem>>, vector<8x32xf32>
    %c0_2 = arith.constant 0 : index
    %c0_3 = arith.constant 0 : index
    %4 = vector.load %arg7[%c0_2, %c0_3] : memref<8x32xf32, #tpu.memory_space<vmem>>, vector<8x32xf32>
    %cst = arith.constant dense<0.000000e+00> : vector<8x8xf32>
    %5 = tpu.matmul %3, %4, %cst {dimension_numbers = #tpu.dot_dimension_numbers<[1], [1], [0], [0], [0, 0, 1, 0], [], []>} : vector<8x32xf32>, vector<8x32xf32>, vector<8x8xf32> -> vector<8x8xf32>
    %c0_4 = arith.constant 0 : index
    %c0_5 = arith.constant 0 : index
    %6 = vector.load %arg4[%c0_4, %c0_5] : memref<8x1xf32, #tpu.memory_space<vmem>>, vector<8x1xf32>
    %c0_6 = arith.constant 0 : index
    %c0_7 = arith.constant 0 : index
    %7 = vector.load %arg5[%c0_6, %c0_7] : memref<1x8xf32, #tpu.memory_space<vmem>>, vector<1x8xf32>
    %8 = vector.broadcast %6 : vector<8x1xf32> to vector<8x8xf32>
    %9 = vector.broadcast %7 : vector<1x8xf32> to vector<8x8xf32>
    %10 = arith.addf %8, %9 : vector<8x8xf32>
    %cst_8 = arith.constant 2.000000e+00 : f32
    %11 = vector.broadcast %cst_8 : f32 to vector<8x8xf32>
    %12 = arith.mulf %11, %5 : vector<8x8xf32>
    %13 = arith.subf %10, %12 : vector<8x8xf32>
    %cst_9 = arith.constant 0.000000e+00 : f32
    %14 = vector.broadcast %cst_9 : f32 to vector<8x8xf32>
    %15 = arith.maximumf %13, %14 : vector<8x8xf32>
    %c0_10 = arith.constant 0 : index
    %c0_11 = arith.constant 0 : index
    %16 = vector.load %arg2[%c0_10, %c0_11] : memref<8x1xi32, #tpu.memory_space<vmem>>, vector<8x1xi32>
    %c0_12 = arith.constant 0 : index
    %c0_13 = arith.constant 0 : index
    %17 = vector.load %arg3[%c0_12, %c0_13] : memref<1x8xi32, #tpu.memory_space<vmem>>, vector<1x8xi32>
    %18 = vector.broadcast %16 : vector<8x1xi32> to vector<8x8xi32>
    %19 = vector.broadcast %17 : vector<1x8xi32> to vector<8x8xi32>
    %20 = arith.cmpi eq, %18, %19 : vector<8x8xi32>
    %c8_i32 = arith.constant 8 : i32
    %21 = arith.muli %arg0, %c8_i32 : i32
    %22 = tpu.iota {dimensions = array<i32: 0>} : vector<8x8xi32>
    %23 = vector.broadcast %21 : i32 to vector<8x8xi32>
    %24 = arith.addi %23, %22 : vector<8x8xi32>
    %c8_i32_14 = arith.constant 8 : i32
    %25 = arith.muli %arg1, %c8_i32_14 : i32
    %26 = tpu.iota {dimensions = array<i32: 1>} : vector<8x8xi32>
    %27 = vector.broadcast %25 : i32 to vector<8x8xi32>
    %28 = arith.addi %27, %26 : vector<8x8xi32>
    %29 = arith.cmpi ne, %24, %28 : vector<8x8xi32>
    %30 = arith.andi %20, %29 : vector<8x8xi1>
    %cst_15 = arith.constant 0.000000e+00 : f32
    %31 = vector.broadcast %cst_15 : f32 to vector<8x8xf32>
    %32 = arith.select %30, %15, %31 : vector<8x8xi1>, vector<8x8xf32>
    %cst_16 = arith.constant 1.000000e+30 : f32
    %33 = vector.broadcast %cst_16 : f32 to vector<8x8xf32>
    %34 = arith.select %20, %33, %15 : vector<8x8xi1>, vector<8x8xf32>
    %c0_17 = arith.constant 0 : index
    %c0_18 = arith.constant 0 : index
    %35 = vector.load %arg9[%c0_17, %c0_18] : memref<8x1xf32, #tpu.memory_space<vmem>>, vector<8x1xf32>
    %cst_19 = arith.constant dense<0xFF800000> : vector<8xf32>
    %36 = vector.multi_reduction <maximumf>, %32, %cst_19 [1] : vector<8x8xf32> to vector<8xf32>
    %37 = vector.shape_cast %36 : vector<8xf32> to vector<8x1xf32>
    %38 = arith.maximumf %35, %37 : vector<8x1xf32>
    %c0_20 = arith.constant 0 : index
    %c0_21 = arith.constant 0 : index
    %39 = vector.load %arg9[%c0_20, %c0_21] : memref<8x1xf32, #tpu.memory_space<vmem>>, vector<8x1xf32>
    tpu.vector_store %arg9[%c0_20, %c0_21], %38 {strides = array<i32>} : memref<8x1xf32, #tpu.memory_space<vmem>>, vector<8x1xf32>,
    %c0_22 = arith.constant 0 : index
    %c0_23 = arith.constant 0 : index
    %40 = vector.load %arg10[%c0_22, %c0_23] : memref<8x1xf32, #tpu.memory_space<vmem>>, vector<8x1xf32>
    %cst_24 = arith.constant dense<0x7F800000> : vector<8xf32>
    %41 = vector.multi_reduction <minimumf>, %34, %cst_24 [1] : vector<8x8xf32> to vector<8xf32>
    %42 = vector.shape_cast %41 : vector<8xf32> to vector<8x1xf32>
    %43 = arith.minimumf %40, %42 : vector<8x1xf32>
    %c0_25 = arith.constant 0 : index
    %c0_26 = arith.constant 0 : index
    %44 = vector.load %arg10[%c0_25, %c0_26] : memref<8x1xf32, #tpu.memory_space<vmem>>, vector<8x1xf32>
    tpu.vector_store %arg10[%c0_25, %c0_26], %43 {strides = array<i32>} : memref<8x1xf32, #tpu.memory_space<vmem>>, vector<8x1xf32>,
    %c0_i32_27 = arith.constant 0 : i32
    %45 = arith.cmpi eq, %arg1, %c0_i32_27 : i32
    %46 = arith.extui %45 : i1 to i32
    %c0_i32_28 = arith.constant 0 : i32
    %47 = arith.cmpi ne, %46, %c0_i32_28 : i32
    scf.if %47 {
      %c0_29 = arith.constant 0 : index
      %c0_30 = arith.constant 0 : index
      %48 = vector.load %arg9[%c0_29, %c0_30] : memref<8x1xf32, #tpu.memory_space<vmem>>, vector<8x1xf32>
      %49 = math.sqrt %48 : vector<8x1xf32>
      %c0_31 = arith.constant 0 : index
      %c0_32 = arith.constant 0 : index
      %50 = vector.load %arg10[%c0_31, %c0_32] : memref<8x1xf32, #tpu.memory_space<vmem>>, vector<8x1xf32>
      %51 = math.sqrt %50 : vector<8x1xf32>
      %52 = arith.subf %49, %51 : vector<8x1xf32>
      %cst_33 = arith.constant 1.000000e+00 : f32
      %53 = vector.broadcast %cst_33 : f32 to vector<8x1xf32>
      %54 = arith.addf %52, %53 : vector<8x1xf32>
      %cst_34 = arith.constant 0.000000e+00 : f32
      %55 = vector.broadcast %cst_34 : f32 to vector<8x1xf32>
      %56 = arith.maximumf %54, %55 : vector<8x1xf32>
      %c0_35 = arith.constant 0 : index
      %c0_36 = arith.constant 0 : index
      %57 = vector.load %arg8[%c0_35, %c0_36] : memref<8x1xf32, #tpu.memory_space<vmem>>, vector<8x1xf32>
      tpu.vector_store %arg8[%c0_35, %c0_36], %56 {strides = array<i32>} : memref<8x1xf32, #tpu.memory_space<vmem>>, vector<8x1xf32>,
    } else {
    }
    return
  }
  func.func @transform_0(%arg0: i32, %arg1: i32) -> (i32, i32) {
    %c0_i32 = arith.constant 0 : i32
    %c0_i32_0 = arith.constant 0 : i32
    return %arg0, %c0_i32 : i32, i32
  }
  func.func @transform_1(%arg0: i32, %arg1: i32) -> (i32, i32) {
    %c0_i32 = arith.constant 0 : i32
    %c0_i32_0 = arith.constant 0 : i32
    return %c0_i32, %arg1 : i32, i32
  }
  func.func @transform_2(%arg0: i32, %arg1: i32) -> (i32, i32) {
    %c0_i32 = arith.constant 0 : i32
    %c0_i32_0 = arith.constant 0 : i32
    return %arg0, %c0_i32 : i32, i32
  }
  func.func @transform_3(%arg0: i32, %arg1: i32) -> (i32, i32) {
    %c0_i32 = arith.constant 0 : i32
    %c0_i32_0 = arith.constant 0 : i32
    return %c0_i32, %arg1 : i32, i32
  }
  func.func @transform_4(%arg0: i32, %arg1: i32) -> (i32, i32) {
    %c0_i32 = arith.constant 0 : i32
    %c0_i32_0 = arith.constant 0 : i32
    return %arg0, %c0_i32 : i32, i32
  }
  func.func @transform_5(%arg0: i32, %arg1: i32) -> (i32, i32) {
    %c0_i32 = arith.constant 0 : i32
    %c0_i32_0 = arith.constant 0 : i32
    return %arg1, %c0_i32 : i32, i32
  }
  func.func @transform_6(%arg0: i32, %arg1: i32) -> (i32, i32) {
    %c0_i32 = arith.constant 0 : i32
    %c0_i32_0 = arith.constant 0 : i32
    return %arg0, %c0_i32 : i32, i32
  }
}

</mosaic_0001>

<llo_original>
// kernel: tpu_custom_call.1
$region0: #{tpu_custom_call.1}
  #allocation0 [shape = 'u32[]', space=smem, size = 0x4, offset = 0x4, fixed_abs, tag = 'smem constant byte address 0x4 - core index']
  #allocation1 [shape = 'u32[144,128]{1,0:T(1,128)}', space=vmem, size = 0x12000, scoped, tag = 'internal scratch']
  #allocation2 [shape = 'f32[8,1]{1,0:T(8,128)}', space=vmem, size = 0x1000, scoped, tag = 'scratch operand']
  #allocation3 [shape = 'f32[8,1]{1,0:T(8,128)}', space=vmem, size = 0x1000, scoped, tag = 'scratch operand']
  %s0 = inlined_call_operand.vmem [shape: s32[8,1], index: 0, kind: input, shape index: {}]
  %s1 = inlined_call_operand.vmem [shape: s32[1,8], index: 1, kind: input, shape index: {}]
  %s2 = inlined_call_operand.vmem [shape: f32[8,1], index: 2, kind: input, shape index: {}]
  %s3 = inlined_call_operand.vmem [shape: f32[1,8], index: 3, kind: input, shape index: {}]
  %s4 = inlined_call_operand.vmem [shape: f32[8,32], index: 4, kind: input, shape index: {}]
  %s5 = inlined_call_operand.vmem [shape: f32[8,32], index: 5, kind: input, shape index: {}]
  %s6 = inlined_call_operand.vmem [shape: f32[8,1], index: 6, kind: output, shape index: {}]
  %s7 = sld [smem:[#allocation0]]
  $region42: #{tpu_custom_call.1} parent=0
    _
  %s9 = ssub.s32 1, %s7
  %s10 = scalar_select 0, %s9, %s7
  // Predicated region
  $region2: #{tpu_custom_call.1} parent=0 // pred_check
    _
  $region3: #{tpu_custom_call.1} parent=0 // pred_check_branch
    %12 = sbr.rel (0) target = $region5
  $region4: #{tpu_custom_call.1} parent=0 // pred_region
    _
  $region5: #{tpu_custom_call.1} parent=0 // pred_fallthru
    _
  // Predicated region
  $region6: #{tpu_custom_call.1} parent=0 // pred_check
    _
  $region7: #{tpu_custom_call.1} parent=0 // pred_check_branch
    %14 = sbr.rel (0) target = $region9
  $region8: #{tpu_custom_call.1} parent=0 // pred_region
    _
  $region9: #{tpu_custom_call.1} parent=0 // pred_fallthru
    _
  // Predicated region
  $region10: #{tpu_custom_call.1} parent=0 // pred_check
    _
  $region11: #{tpu_custom_call.1} parent=0 // pred_check_branch
    %16 = sbr.rel (0) target = $region13
  $region12: #{tpu_custom_call.1} parent=0 // pred_region
    _
  $region13: #{tpu_custom_call.1} parent=0 // pred_fallthru
    _
  // Predicated region
  $region14: #{tpu_custom_call.1} parent=0 // pred_check
    _
  $region15: #{tpu_custom_call.1} parent=0 // pred_check_branch
    %18 = sbr.rel (0) target = $region17
  $region16: #{tpu_custom_call.1} parent=0 // pred_region
    _
  $region17: #{tpu_custom_call.1} parent=0 // pred_fallthru
    _
  // Predicated region
  $region18: #{tpu_custom_call.1} parent=0 // pred_check
    _
  $region19: #{tpu_custom_call.1} parent=0 // pred_check_branch
    %20 = sbr.rel (0) target = $region21
  $region20: #{tpu_custom_call.1} parent=0 // pred_region
    _
  $region21: #{tpu_custom_call.1} parent=0 // pred_fallthru
    _
  // Predicated region
  $region22: #{tpu_custom_call.1} parent=0 // pred_check
    _
  $region23: #{tpu_custom_call.1} parent=0 // pred_check_branch
    %22 = sbr.rel (0) target = $region25
  $region24: #{tpu_custom_call.1} parent=0 // pred_region
    _
  $region25: #{tpu_custom_call.1} parent=0 // pred_fallthru
    _
  %p23 = scmp.eq.s32.totalorder 0, 0
  // Predicated region
  $region26: #{tpu_custom_call.1} parent=0 // pred_check
    %p24 = pneg %p23
  $region27: #{tpu_custom_call.1} parent=0 // pred_check_branch
    %26 = sbr.rel (%p24) target = $region29
  $region28: #{tpu_custom_call.1} parent=0 // pred_region
    %vm27 = vcmask 7168
    %28 = vst.msk [vmem:[#allocation2] sm:$0xff] %vm27, 0.0
    %29 = vst.msk [vmem:[#allocation3] sm:$0xff] %vm27, 1e+30
  $region29: #{tpu_custom_call.1} parent=0 // pred_fallthru
    _
  %v30 = vld [vmem:[%s4] sm:$0xff]
  %v31 = vld [vmem:[%s5] sm:$0xff]
  %vm32 = vcmask 261120
  %v34 = vsel %vm32, %v30, 0
  %v37 = vsel %vm32, %v31, 0
  %39 = vmatprep.subr.mxu0 0.0
  %40 = vmatpush1.xpose.msra.mxu0 %v37
  %41 = vmatprep.subr.mxu0 0.0
  %42 = vmatpush1.xpose.msra.mxu0 0.0
  %43 = vmatprep.subr.mxu0 0.0
  %44 = vmatpush1.xpose.msra.mxu0 0.0
  %45 = vmatprep.subr.mxu0 0.0
  %46 = vmatpush1.xpose.msra.mxu0 0.0
  %47 = vmatprep.subr.mxu0 0.0
  %48 = vmatpush1.xpose.msra.mxu0 0.0
  %49 = vmatprep.subr.mxu0 0.0
  %50 = vmatpush1.xpose.msra.mxu0 0.0
  %51 = vmatprep.subr.mxu0 0.0
  %52 = vmatpush1.xpose.msra.mxu0 0.0
  %53 = vmatprep.subr.mxu0 0.0
  %54 = vmatpush1.xpose.msra.mxu0 0.0
  %55 = vmatprep.subr.mxu0 0.0
  %56 = vmatpush1.xpose.msra.mxu0 0.0
  %57 = vmatprep.subr.mxu0 0.0
  %58 = vmatpush1.xpose.msra.mxu0 0.0
  %59 = vmatprep.subr.mxu0 0.0
  %60 = vmatpush1.xpose.msra.mxu0 0.0
  %61 = vmatprep.subr.mxu0 0.0
  %62 = vmatpush1.xpose.msra.mxu0 0.0
  %63 = vmatprep.subr.mxu0 0.0
  %64 = vmatpush1.xpose.msra.mxu0 0.0
  %65 = vmatprep.subr.mxu0 0.0
  %66 = vmatpush1.xpose.msra.mxu0 0.0
  %67 = vmatprep.subr.mxu0 0.0
  %68 = vmatpush1.xpose.msra.mxu0 0.0
  %69 = vmatprep.subr.mxu0 0.0
  %70 = vmatpush1.xpose.msra.mxu0 0.0
  %71 = vmatprep.subr.mxu0 0.0
  %72 = vmatpush1.xpose.msra.mxu0 0.0
  %73 = vmatprep.subr.mxu0 0.0
  %74 = vmatpush1.xpose.msra.mxu0 0.0
  %75 = vmatprep.subr.mxu0 0.0
  %76 = vmatpush1.xpose.msra.mxu0 0.0
  %77 = vmatprep.subr.mxu0 0.0
  %78 = vmatpush1.xpose.msra.mxu0 0.0
  %79 = vmatprep.subr.mxu0 0.0
  %80 = vmatpush1.xpose.msra.mxu0 0.0
  %81 = vmatprep.subr.mxu0 0.0
  %82 = vmatpush1.xpose.msra.mxu0 0.0
  %83 = vmatprep.subr.mxu0 0.0
  %84 = vmatpush1.xpose.msra.mxu0 0.0
  %85 = vmatprep.subr.mxu0 0.0
  %86 = vmatpush1.xpose.msra.mxu0 0.0
  %87 = vmatprep.subr.mxu0 0.0
  %88 = vmatpush1.xpose.msra.mxu0 0.0
  %89 = vmatprep.subr.mxu0 0.0
  %90 = vmatpush1.xpose.msra.mxu0 0.0
  %91 = vmatprep.subr.mxu0 0.0
  %92 = vmatpush1.xpose.msra.mxu0 0.0
  %93 = vmatprep.subr.mxu0 0.0
  %94 = vmatpush1.xpose.msra.mxu0 0.0
  %95 = vmatprep.subr.mxu0 0.0
  %96 = vmatpush1.xpose.msra.mxu0 0.0
  %97 = vmatprep.subr.mxu0 0.0
  %98 = vmatpush1.xpose.msra.mxu0 0.0
  %99 = vmatprep.subr.mxu0 0.0
  %100 = vmatpush1.xpose.msra.mxu0 0.0
  %101 = vmatprep.subr.mxu0 0.0
  %102 = vmatpush1.xpose.msra.mxu0 0.0
  %103 = vmatprep.mubr.f32.mxu0 0.0
  %104 = vmatmul.mubr.f32.gmra.mrb[0].mxu0 %v34
  %v105 = vpop.f32.mrb[0].mxu0
  %v106 = vadd.f32 0.0, %v105
  %v107 = vpop.f32.mrb[0].mxu0
  %108 = vdwg.mxu0
  %v109 = vld [vmem:[%s2] sm:$0xff]
  %v110 = vld [vmem:[%s3] sm:$0x1]
  %112 = vset.pattern.permute.xlu0 0
  %113 = vperm.xlu0 %112, %v109
  %v114 = vpop.permute.xlu0 %113
  %v117 = vlaneseq
  %v118 = vshrl.u32 %v117, 7
  %v119 = vsub.s32 0, %v118
  %v120 = vrot.slane %v110, %v119
  %v122 = vadd.f32 %v114, %v120
  %v123 = vmul.f32 %v106, 2.0
  %v124 = vsub.f32 %v122, %v123
  %v125 = vmax.f32 %v124, 0.0
  %v126 = vld [vmem:[%s0] sm:$0xff]
  %v127 = vld [vmem:[%s1] sm:$0x1]
  %128 = vset.pattern.permute.xlu0 0
  %129 = vperm.xlu0 %128, %v126
  %v130 = vpop.permute.xlu0 %129
  %v131 = vlaneseq
  %v132 = vshrl.u32 %v131, 7
  %v133 = vsub.s32 0, %v132
  %v134 = vrot.slane %v127, %v133
  %vm135 = vcmp.eq.s32.totalorder %v130, %v134
  %s136 = smul.u32 0, 8
  %v137 = vlaneseq
  %v138 = vshrl.u32 %v137, 7
  %v139 = vstv %s136
  %v140 = vadd.s32 %v139, %v138
  %s141 = smul.u32 0, 8
  %v142 = vlaneseq
  %v143 = vand.u32 %v142, 127
  %v144 = vstv %s141
  %v145 = vadd.s32 %v144, %v143
  %vm146 = vcmp.ne.s32.totalorder %v140, %v145
  %vm147 = vmand %vm135, %vm146
  %v148 = vsel %vm147, %v125, 0.0
  %v149 = vsel %vm135, 1e+30, %v125
  %v150 = vld [vmem:[#allocation2] sm:$0xff]
  %vm151 = vcmask 64512
  %v152 = vsel %vm151, %v148, -inf
  %153 = vmax.xlane.f32.xlu0 %v152
  %v154 = vpop.xlane.xlu0 %153
  %v155 = vmax.f32 %v150, %v154
  %vm156 = vcmask 7168
  %157 = vst.msk [vmem:[#allocation2] sm:$0xff] %vm156, %v155
  %v158 = vld [vmem:[#allocation3] sm:$0xff]
  %v159 = vsel %vm151, %v149, inf
  %160 = vmin.xlane.f32.xlu0 %v159
  %v161 = vpop.xlane.xlu0 %160
  %v162 = vmin.f32 %v158, %v161
  %163 = vst.msk [vmem:[#allocation3] sm:$0xff] %vm156, %v162
  // Predicated region
  $region30: #{tpu_custom_call.1} parent=0 // pred_check
    %p164 = pneg %p23
  $region31: #{tpu_custom_call.1} parent=0 // pred_check_branch
    %166 = sbr.rel (%p164) target = $region33
  $region32: #{tpu_custom_call.1} parent=0 // pred_region
    %v167 = vld [vmem:[#allocation2] sm:$0xff]
    %v168 = vrsqrt.pop %v167
    %v169 = vmul.f32 %v167, %v168
    %vm170 = vcmp.eq.f32.partialorder %v167, inf
    %v171 = vsel %vm170, %v167, %v169
    %vm172 = vcmp.eq.f32.partialorder %v167, 0.0
    %v173 = vand.u32 %v167, 2147483648
    %v174 = vsel %vm172, %v173, %v171
    %v175 = vld [vmem:[#allocation3] sm:$0xff]
    %v176 = vrsqrt.pop %v175
    %v177 = vmul.f32 %v175, %v176
    %vm178 = vcmp.eq.f32.partialorder %v175, inf
    %v179 = vsel %vm178, %v175, %v177
    %vm180 = vcmp.eq.f32.partialorder %v175, 0.0
    %v181 = vand.u32 %v175, 2147483648
    %v182 = vsel %vm180, %v181, %v179
    %v183 = vsub.f32 %v174, %v182
    %v184 = vadd.f32 %v183, 1.0
    %v185 = vmax.f32 %v184, 0.0
    %186 = vst.msk [vmem:[%s6] sm:$0xff] %vm156, %v185
  $region33: #{tpu_custom_call.1} parent=0 // pred_fallthru
    _
  // Predicated region
  $region34: #{tpu_custom_call.1} parent=0 // pred_check
    _
  $region35: #{tpu_custom_call.1} parent=0 // pred_check_branch
    %188 = sbr.rel (0) target = $region37
  $region36: #{tpu_custom_call.1} parent=0 // pred_region
    _
  $region37: #{tpu_custom_call.1} parent=0 // pred_fallthru
    _
  // Predicated region
  $region38: #{tpu_custom_call.1} parent=0 // pred_check
    _
  $region39: #{tpu_custom_call.1} parent=0 // pred_check_branch
    %190 = sbr.rel (0) target = $region41
  $region40: #{tpu_custom_call.1} parent=0 // pred_region
    _
  $region41: #{tpu_custom_call.1} parent=0 // pred_fallthru
    _

</llo_original>
